<compile_context>
chip_gen: v5e
topology: v5e:2x2
jax: 0.10.0
libtpu: 0.0.40
codegen_flags: <defaults>
</compile_context>

<pallas_src>
import functools

import numpy as np
import jax
import jax.numpy as jnp
from jax.experimental import pallas as pl
from jax.experimental.pallas import tpu as pltpu


_LANES = 512                      # lane-dense last dim (multiple of 128)
_MAX_TILE_ROWS = 512              # 512 x 512 x 4B = 1 MiB per f32 block
_VMEM_LIMIT_BYTES = 32 * 1024 * 1024   # safe on v5e/v6e (128 MiB) and v7x (64 MiB)


def _choose_tiling(n):
    """Flattened length n -> (padded_rows, lanes, tile_rows)."""
    L = _LANES
    rows = -(-n // L)                       # ceil(n / L)
    rows = ((rows + 7) // 8) * 8            # sublane multiple
    if rows <= _MAX_TILE_ROWS:
        tile_rows = rows                    # single big tile
    else:
        tile_rows = _MAX_TILE_ROWS
        rows = ((rows + tile_rows - 1) // tile_rows) * tile_rows
    return rows, L, tile_rows


# ----------------------------- Pallas kernels ------------------------------ #

def _lif_step_kernel(x_ref, mem_ref, spk_ref, mem_out_ref, *, beta, threshold):
    """Single-timestep elementwise LIF update on one (tile_rows, L) VMEM tile."""
    x = x_ref[...].astype(jnp.float32)
    mem = mem_ref[...].astype(jnp.float32)
    # NOTE: heaviside at exact equality differs; we use strict > (as before).
    spk = (mem > threshold).astype(jnp.float32)
    mem_new = (beta * mem + x) * (1.0 - spk)
    spk_ref[...] = spk.astype(spk_ref.dtype)
    mem_out_ref[...] = mem_new.astype(mem_out_ref.dtype)


def _lif_seq_kernel(x_ref, mem0_ref, spk_ref, memT_ref, mem_acc,
                    *, beta, threshold):
    """Fused T-timestep LIF rollout; membrane stays resident in VMEM scratch."""
    t = pl.program_id(1)

    @pl.when(t == 0)
    def _():
        mem_acc[...] = mem0_ref[...].astype(jnp.float32)

    mem = mem_acc[...]
    x = x_ref[0].astype(jnp.float32)
    spk = (mem > threshold).astype(jnp.float32)
    mem_new = (beta * mem + x) * (1.0 - spk)

    spk_ref[0] = spk.astype(spk_ref.dtype)
    mem_acc[...] = mem_new

    @pl.when(t == pl.num_programs(1) - 1)
    def _():
        memT_ref[...] = mem_new.astype(memT_ref.dtype)


# ------------------------- Cached kernel builders --------------------------- #

@functools.lru_cache(maxsize=None)
def _get_lif_step(x_shape, dtype_name, beta, threshold):
    """Build (once) a jitted single-step LIF fn for a given shape/dtype/params."""
    dtype = jnp.dtype(dtype_name)
    n = int(np.prod(x_shape))
    rows, lanes, tile_rows = _choose_tiling(n)
    pad = rows * lanes - n

    kernel = functools.partial(_lif_step_kernel, beta=beta, threshold=threshold)
    blk = pl.BlockSpec((tile_rows, lanes), lambda i: (i, 0))

    call = pl.pallas_call(
        kernel,
        out_shape=(
            jax.ShapeDtypeStruct((rows, lanes), dtype),   # spk
            jax.ShapeDtypeStruct((rows, lanes), dtype),   # mem_new
        ),
        grid_spec=pltpu.PrefetchScalarGridSpec(
            num_scalar_prefetch=0,
            grid=(rows // tile_rows,),
            in_specs=[blk, blk],
            out_specs=[blk, blk],
        ),
        input_output_aliases={1: 1},        # mem updated in place
        compiler_params=pltpu.CompilerParams(
            dimension_semantics=("parallel",),
            vmem_limit_bytes=_VMEM_LIMIT_BYTES,
        ),
    )

    @jax.jit
    def step(x, mem):
        xf = x.reshape(-1)
        mf = mem.reshape(-1)
        if pad:
            xf = jnp.pad(xf, (0, pad))
            mf = jnp.pad(mf, (0, pad))
        spk2, mem2 = call(xf.reshape(rows, lanes), mf.reshape(rows, lanes))
        spk = spk2.reshape(-1)[:n].reshape(x_shape)
        mem_new = mem2.reshape(-1)[:n].reshape(x_shape)
        return spk, mem_new

    return step


@functools.lru_cache(maxsize=None)
def _get_lif_sequence(T, x_shape, dtype_name, beta, threshold):
    """Build (once) a jitted fused T-step LIF rollout for shape/dtype/params."""
    dtype = jnp.dtype(dtype_name)
    n = int(np.prod(x_shape))
    rows, lanes, tile_rows = _choose_tiling(n)
    pad = rows * lanes - n

    kernel = functools.partial(_lif_seq_kernel, beta=beta, threshold=threshold)
    x_spec = pl.BlockSpec((1, tile_rows, lanes), lambda i, t: (t, i, 0))
    m_spec = pl.BlockSpec((tile_rows, lanes), lambda i, t: (i, 0))

    call = pl.pallas_call(
        kernel,
        out_shape=(
            jax.ShapeDtypeStruct((T, rows, lanes), dtype),   # spikes, all steps
            jax.ShapeDtypeStruct((rows, lanes), dtype),      # final membrane
        ),
        grid_spec=pltpu.PrefetchScalarGridSpec(
            num_scalar_prefetch=0,
            grid=(rows // tile_rows, T),
            in_specs=[x_spec, m_spec],
            out_specs=[x_spec, m_spec],
            scratch_shapes=[pltpu.VMEM((tile_rows, lanes), jnp.float32)],
        ),
        input_output_aliases={1: 1},        # mem updated in place
        compiler_params=pltpu.CompilerParams(
            dimension_semantics=("parallel", "arbitrary"),
            vmem_limit_bytes=_VMEM_LIMIT_BYTES,
        ),
    )

    @jax.jit
    def rollout(xs, mem):
        xf = xs.reshape(T, -1)
        mf = mem.reshape(-1)
        if pad:
            xf = jnp.pad(xf, ((0, 0), (0, pad)))
            mf = jnp.pad(mf, (0, pad))
        spk3, memT = call(xf.reshape(T, rows, lanes), mf.reshape(rows, lanes))
        spks = spk3.reshape(T, -1)[:, :n].reshape((T,) + x_shape)
        mem_final = memT.reshape(-1)[:n].reshape(x_shape)
        return spks, mem_final

    return rollout


# ------------------------------ Module wrapper ------------------------------ #

class LIFlayer:
    """JAX/Pallas port of the PyTorch LIFlayer module (forward pass only)."""

    def __init__(self, tau_mem=0.01, threshold=1.0, t_step=0.006, output=False):
        self.t_step = t_step
        self.tau_mem = tau_mem
        self.threshold = float(threshold)
        self.beta = float(np.exp(-self.t_step / self.tau_mem))
        self.output = output
        self.forwarded = False
        self.mem = None

    def reset_mem(self):
        self.forwarded = False

    def forward(self, x, k):
        # k: surrogate-gradient slope; only used in the (unimplemented) backward.
        del k
        x_shape = tuple(x.shape)
        if (self.mem is None) or (not self.forwarded) or (tuple(self.mem.shape) != x_shape):
            self.mem = jnp.zeros(x_shape, x.dtype)
            self.forwarded = True

        step = _get_lif_step(x_shape, jnp.dtype(x.dtype).name,
                             self.beta, self.threshold)
        spk, self.mem = step(x, self.mem)

        if self.output:
            return spk, self.mem
        return spk

    def forward_sequence(self, xs, k):
        """Fused rollout over a whole sequence xs of shape (T, *x_shape).

        Returns (spks[T, ...], final mem) when output=True, else spks.
        The membrane state stays resident in VMEM across all T steps.
        """
        del k
        T = int(xs.shape[0])
        x_shape = tuple(xs.shape[1:])
        if (self.mem is None) or (not self.forwarded) or (tuple(self.mem.shape) != x_shape):
            self.mem = jnp.zeros(x_shape, xs.dtype)
            self.forwarded = True

        rollout = _get_lif_sequence(T, x_shape, jnp.dtype(xs.dtype).name,
                                    self.beta, self.threshold)
        spks, self.mem = rollout(xs, self.mem)

        if self.output:
            return spks, self.mem
        return spks

    __call__ = forward


# --------------------------------- Demo ------------------------------------- #

def _reference_step(x, mem, beta, threshold):
    spk = (mem > threshold).astype(x.dtype)
    mem_new = (beta * mem + x) * (1.0 - spk)
    return spk, mem_new


if __name__ == "__main__":
    key = jax.random.PRNGKey(0)
    B, C, H, W = 2, 4, 16, 16          # NCHW, matches PyTorch convention
    T = 8                               # timesteps
    k_slope = 25.0                      # surrogate slope (unused in fwd)

    keys = jax.random.split(key, T)
    xs = jnp.stack([2.0 * jax.random.uniform(kk, (B, C, H, W), dtype=jnp.float32)
                    for kk in keys])

    # --- Stepwise (stateful, one pallas_call per timestep) -------------------
    layer = LIFlayer(output=True)
    spks_step, mems_step = [], []
    for t in range(T):
        spk_t, mem_t = layer(xs[t], k_slope)
        spks_step.append(spk_t)
        mems_step.append(mem_t)
    jax.block_until_ready((spks_step, mems_step))

    # Pure-JAX reference of the same recurrence.
    mem_ref = jnp.zeros((B, C, H, W), jnp.float32)
    for t in range(T):
        spk_ref, mem_ref = _reference_step(xs[t], mem_ref, layer.beta, layer.threshold)
        assert np.allclose(np.asarray(spks_step[t]), np.asarray(spk_ref)), f"spk mismatch t={t}"
        assert np.allclose(np.asarray(mems_step[t]), np.asarray(mem_ref), atol=1e-6), f"mem mismatch t={t}"

    # --- Fused sequence (single pallas_call, mem resident in VMEM) -----------
    layer_seq = LIFlayer(output=True)
    spks_seq, mem_final = layer_seq.forward_sequence(xs, k_slope)
    jax.block_until_ready((spks_seq, mem_final))

    for t in range(T):
        assert np.allclose(np.asarray(spks_seq[t]), np.asarray(spks_step[t])), f"seq spk mismatch t={t}"
    assert np.allclose(np.asarray(mem_final), np.asarray(mems_step[-1]), atol=1e-6), "seq mem mismatch"

    print("KERNEL_OK")
</pallas_src>

<mosaic_0001>
module attributes {stable_mosaic.version = 11 : i64} {
  func.func @_lif_step_kernel(%arg0: i32, %arg1: memref<8x512xf32, #tpu.memory_space<vmem>>, %arg2: memref<8x512xf32, #tpu.memory_space<vmem>>, %arg3: memref<8x512xf32, #tpu.memory_space<vmem>>, %arg4: memref<8x512xf32, #tpu.memory_space<vmem>>) attributes {dimension_semantics = [#tpu.dimension_semantics<parallel>], iteration_bounds = array<i64: 1>, scalar_prefetch = 0 : i64, scratch_operands = 0 : i64, tpu.core_type = #tpu.core_type<tc>, window_params = [{transform_indices = @transform_0, window_bounds = array<i64: 8, 512>}, {transform_indices = @transform_1, window_bounds = array<i64: 8, 512>}, {transform_indices = @transform_2, window_bounds = array<i64: 8, 512>}, {transform_indices = @transform_3, window_bounds = array<i64: 8, 512>}]} {
    %c0 = arith.constant 0 : index
    %c0_0 = arith.constant 0 : index
    %0 = vector.load %arg1[%c0, %c0_0] : memref<8x512xf32, #tpu.memory_space<vmem>>, vector<8x512xf32>
    %c0_1 = arith.constant 0 : index
    %c0_2 = arith.constant 0 : index
    %1 = vector.load %arg2[%c0_1, %c0_2] : memref<8x512xf32, #tpu.memory_space<vmem>>, vector<8x512xf32>
    %cst = arith.constant 1.000000e+00 : f32
    %2 = vector.broadcast %cst : f32 to vector<8x512xf32>
    %3 = arith.cmpf ogt, %1, %2 : vector<8x512xf32>
    %4 = arith.extui %3 : vector<8x512xi1> to vector<8x512xi32>
    %5 = arith.sitofp %4 : vector<8x512xi32> to vector<8x512xf32>
    %cst_3 = arith.constant 0.548811615 : f32
    %6 = vector.broadcast %cst_3 : f32 to vector<8x512xf32>
    %7 = arith.mulf %6, %1 : vector<8x512xf32>
    %8 = arith.addf %7, %0 : vector<8x512xf32>
    %cst_4 = arith.constant 1.000000e+00 : f32
    %9 = vector.broadcast %cst_4 : f32 to vector<8x512xf32>
    %10 = arith.subf %9, %5 : vector<8x512xf32>
    %11 = arith.mulf %8, %10 : vector<8x512xf32>
    %c0_5 = arith.constant 0 : index
    %c0_6 = arith.constant 0 : index
    %12 = vector.load %arg3[%c0_5, %c0_6] : memref<8x512xf32, #tpu.memory_space<vmem>>, vector<8x512xf32>
    tpu.vector_store %arg3[%c0_5, %c0_6], %5 {strides = array<i32>} : memref<8x512xf32, #tpu.memory_space<vmem>>, vector<8x512xf32>,
    %c0_7 = arith.constant 0 : index
    %c0_8 = arith.constant 0 : index
    %13 = vector.load %arg4[%c0_7, %c0_8] : memref<8x512xf32, #tpu.memory_space<vmem>>, vector<8x512xf32>
    tpu.vector_store %arg4[%c0_7, %c0_8], %11 {strides = array<i32>} : memref<8x512xf32, #tpu.memory_space<vmem>>, vector<8x512xf32>,
    return
  }
  func.func @transform_0(%arg0: i32) -> (i32, i32) {
    %c0_i32 = arith.constant 0 : i32
    %c0_i32_0 = arith.constant 0 : i32
    return %arg0, %c0_i32 : i32, i32
  }
  func.func @transform_1(%arg0: i32) -> (i32, i32) {
    %c0_i32 = arith.constant 0 : i32
    %c0_i32_0 = arith.constant 0 : i32
    return %arg0, %c0_i32 : i32, i32
  }
  func.func @transform_2(%arg0: i32) -> (i32, i32) {
    %c0_i32 = arith.constant 0 : i32
    %c0_i32_0 = arith.constant 0 : i32
    return %arg0, %c0_i32 : i32, i32
  }
  func.func @transform_3(%arg0: i32) -> (i32, i32) {
    %c0_i32 = arith.constant 0 : i32
    %c0_i32_0 = arith.constant 0 : i32
    return %arg0, %c0_i32 : i32, i32
  }
}

</mosaic_0001>

<llo_original>
// kernel: step.1
$region0: #{step.1}
  #allocation0 [shape = 'u32[]', space=smem, size = 0x4, offset = 0x4, fixed_abs, tag = 'smem constant byte address 0x4 - core index']
  #allocation1 [shape = 'u32[72,128]{1,0:T(1,128)}', space=vmem, size = 0x9000, scoped, tag = 'internal scratch']
  %s0 = inlined_call_operand.vmem [shape: f32[8,512], index: 0, kind: input, shape index: {}]
  %s1 = inlined_call_operand.vmem [shape: f32[8,512], index: 1, kind: input, shape index: {}, may-alias: {1,3}]
  %s2 = inlined_call_operand.vmem [shape: f32[8,512], index: 2, kind: output, shape index: {0}]
  %s3 = inlined_call_operand.vmem [shape: f32[8,512], index: 3, kind: output, shape index: {1}, may-alias: {1,3}]
  %4 = xla_tuple %s2, %s3
  %s5 = sld [smem:[#allocation0]]
  $region26: #{step.1} parent=0
    _
  %s7 = ssub.s32 1, %s5
  %s8 = scalar_select 0, %s7, %s5
  // Predicated region
  $region2: #{step.1} parent=0 // pred_check
    _
  $region3: #{step.1} parent=0 // pred_check_branch
    %10 = sbr.rel (0) target = $region5
  $region4: #{step.1} parent=0 // pred_region
    _
  $region5: #{step.1} parent=0 // pred_fallthru
    _
  // Predicated region
  $region6: #{step.1} parent=0 // pred_check
    _
  $region7: #{step.1} parent=0 // pred_check_branch
    %12 = sbr.rel (0) target = $region9
  $region8: #{step.1} parent=0 // pred_region
    _
  $region9: #{step.1} parent=0 // pred_fallthru
    _
  %v13 = vld [vmem:[%s0] sm:$0xff]
  %v14 = vld [vmem:[%s0 + $0x8] sm:$0xff]
  %v15 = vld [vmem:[%s0 + $0x10] sm:$0xff]
  %v16 = vld [vmem:[%s0 + $0x18] sm:$0xff]
  %v17 = vld [vmem:[%s1] sm:$0xff]
  %v18 = vld [vmem:[%s1 + $0x8] sm:$0xff]
  %v19 = vld [vmem:[%s1 + $0x10] sm:$0xff]
  %v20 = vld [vmem:[%s1 + $0x18] sm:$0xff]
  %vm21 = vcmp.gt.f32.partialorder %v17, 1.0
  %vm22 = vcmp.gt.f32.partialorder %v18, 1.0
  %vm23 = vcmp.gt.f32.partialorder %v19, 1.0
  %vm24 = vcmp.gt.f32.partialorder %v20, 1.0
  %v25 = vsel %vm21, 1, 0
  %v26 = vsel %vm22, 1, 0
  %v27 = vsel %vm23, 1, 0
  %v28 = vsel %vm24, 1, 0
  %v29 = vcvt.s32.f32 %v25
  %v30 = vcvt.s32.f32 %v26
  %v31 = vcvt.s32.f32 %v27
  %v32 = vcvt.s32.f32 %v28
  %v33 = vmul.f32 %v17, 0.5488116
  %v34 = vmul.f32 %v18, 0.5488116
  %v35 = vmul.f32 %v19, 0.5488116
  %v36 = vmul.f32 %v20, 0.5488116
  %v37 = vadd.f32 %v33, %v13
  %v38 = vadd.f32 %v34, %v14
  %v39 = vadd.f32 %v35, %v15
  %v40 = vadd.f32 %v36, %v16
  %v41 = vsub.f32 1.0, %v29
  %v42 = vsub.f32 1.0, %v30
  %v43 = vsub.f32 1.0, %v31
  %v44 = vsub.f32 1.0, %v32
  %v45 = vmul.f32 %v37, %v41
  %v46 = vmul.f32 %v38, %v42
  %v47 = vmul.f32 %v39, %v43
  %v48 = vmul.f32 %v40, %v44
  %49 = vst [vmem:[%s2] sm:$0xff] %v29
  %50 = vst [vmem:[%s2 + $0x8] sm:$0xff] %v30
  %51 = vst [vmem:[%s2 + $0x10] sm:$0xff] %v31
  %52 = vst [vmem:[%s2 + $0x18] sm:$0xff] %v32
  %53 = vst [vmem:[%s3] sm:$0xff] %v45
  %54 = vst [vmem:[%s3 + $0x8] sm:$0xff] %v46
  %55 = vst [vmem:[%s3 + $0x10] sm:$0xff] %v47
  %56 = vst [vmem:[%s3 + $0x18] sm:$0xff] %v48
  // Predicated region
  $region10: #{step.1} parent=0 // pred_check
    _
  $region11: #{step.1} parent=0 // pred_check_branch
    %58 = sbr.rel (0) target = $region13
  $region12: #{step.1} parent=0 // pred_region
    _
  $region13: #{step.1} parent=0 // pred_fallthru
    _
  // Predicated region
  $region14: #{step.1} parent=0 // pred_check
    _
  $region15: #{step.1} parent=0 // pred_check_branch
    %60 = sbr.rel (0) target = $region17
  $region16: #{step.1} parent=0 // pred_region
    _
  $region17: #{step.1} parent=0 // pred_fallthru
    _
  // Predicated region
  $region18: #{step.1} parent=0 // pred_check
    _
  $region19: #{step.1} parent=0 // pred_check_branch
    %62 = sbr.rel (0) target = $region21
  $region20: #{step.1} parent=0 // pred_region
    _
  $region21: #{step.1} parent=0 // pred_fallthru
    _
  // Predicated region
  $region22: #{step.1} parent=0 // pred_check
    _
  $region23: #{step.1} parent=0 // pred_check_branch
    %64 = sbr.rel (0) target = $region25
  $region24: #{step.1} parent=0 // pred_region
    _
  $region25: #{step.1} parent=0 // pred_fallthru
    _

</llo_original>
